<compile_context>
chip_gen: v7x
topology: tpu7x:2x2x1
jax: 0.10.0
libtpu: 0.0.40
codegen_flags: <defaults>
</compile_context>

<pallas_src>
import math
import functools

import jax
import jax.numpy as jnp
from jax.experimental import pallas as pl
from jax.experimental.pallas import tpu as pltpu

_MIB = 1024 * 1024


def _gelu_erf(x):
    # Exact gelu: x * 0.5 * (1 + erf(x / sqrt(2)))  (f32 math on VPU/EUP)
    return x * 0.5 * (1.0 + jax.lax.erf(x / math.sqrt(2.0)))


def _round_up(x, m):
    return ((x + m - 1) // m) * m


def _vmem_capacity_bytes():
    """Physical VMEM per core; conservative fallback (v7x per-TC) if unknown."""
    try:
        info = pltpu.get_tpu_info()
        cap = getattr(info, "vmem_capacity_bytes", None)
        if cap:
            return int(cap)
    except Exception:
        pass
    return 64 * _MIB


def _vmem_estimate(tn, tv, H, mm_bytes, out_bytes):
    """Rough VMEM footprint of the kernel for a given tile config."""
    x_buf = 2 * tn * H * mm_bytes          # double-buffered row tile
    w1_buf = 2 * H * H * mm_bytes          # dense weight (resident)
    w2_buf = 2 * tv * H * mm_bytes         # double-buffered decoder tile
    out_buf = 2 * tn * tv * out_bytes      # double-buffered output tile
    ln_scr = tn * H * mm_bytes             # cached LN scratch
    f32_tmp = 2 * tn * H * 4               # dense/gelu/LN f32 intermediates
    small = 64 * 1024                      # biases / LN params / slack
    return x_buf + w1_buf + w2_buf + out_buf + ln_scr + f32_tmp + small


def _lm_head_kernel(x_ref, w1_ref, b1_ref, gamma_ref, beta_ref,
                    w2_ref, bias_ref, out_ref, ln_ref, *, eps):
    # x_ref:     (TN, H)   bf16 row tile of flattened features
    # w1_ref:    (H, H)    bf16 dense weight (in, out), resident across grid
    # b1_ref:    (1, H)    f32 dense bias
    # gamma_ref: (1, H)    f32 layer-norm weight
    # beta_ref:  (1, H)    f32 layer-norm bias
    # w2_ref:    (H, TV)   bf16 decoder weight tile (in, out)
    # bias_ref:  (1, TV)   f32 decoder output bias tile
    # out_ref:   (TN, TV)  output logits tile
    # ln_ref:    (TN, H)   VMEM scratch caching the LN output (matmul dtype)

    # dense + gelu + layer-norm only on the first vocab tile of each row tile;
    # every subsequent vocab tile reuses the cached result.  Temporaries are
    # kept to a minimum (g and g-mu) to limit f32 VMEM/vreg pressure.
    @pl.when(pl.program_id(1) == 0)
    def _compute_ln():
        g = _gelu_erf(
            jnp.dot(x_ref[...], w1_ref[...],
                    preferred_element_type=jnp.float32) + b1_ref[...])
        mu = jnp.mean(g, axis=-1, keepdims=True)
        d = g - mu
        var = jnp.mean(d * d, axis=-1, keepdims=True)   # biased variance
        # Padded zero rows: var == 0 -> rsqrt(eps), finite for eps > 0.
        ln = d * (jax.lax.rsqrt(var + eps) * gamma_ref[...]) + beta_ref[...]
        ln_ref[...] = ln.astype(ln_ref.dtype)

    # Decoder matmul for this vocab tile + per-tile output bias.
    logits = jnp.dot(ln_ref[...], w2_ref[...],
                     preferred_element_type=jnp.float32) + bias_ref[...]
    out_ref[...] = logits.astype(out_ref.dtype)


def prepare_lm_head_params(dense_w, dense_b, ln_w, ln_b, dec_w, dec_b,
                           *, tile_v=1024, matmul_dtype=jnp.bfloat16):
    """One-time parameter prep (hoisted out of the hot path).

    Pads the decoder weight / bias along V to a multiple of the vocab tile and
    casts the matmul weights to bf16 ONCE, instead of paying that full-array
    HBM copy on every forward call.  Weights are stored (in, out).
    """
    H = dense_w.shape[0]
    V = dec_w.shape[1]
    tv = min(tile_v, _round_up(V, 128))
    Vp = _round_up(V, tv)

    w2 = dec_w.astype(matmul_dtype)
    b2 = dec_b.astype(jnp.float32)
    if Vp != V:
        w2 = jnp.pad(w2, ((0, 0), (0, Vp - V)))
        b2 = jnp.pad(b2, ((0, Vp - V),))

    return {
        "w1": dense_w.astype(matmul_dtype),
        "b1": dense_b.astype(jnp.float32).reshape(1, H),
        "gamma": ln_w.astype(jnp.float32).reshape(1, H),
        "beta": ln_b.astype(jnp.float32).reshape(1, H),
        "w2": w2,
        "b2": b2.reshape(1, Vp),
        "vocab_size": V,
        "tile_v": tv,
        "matmul_dtype": matmul_dtype,
    }


def roberta_lm_head_apply(features, params, *, eps=1e-5, tile_n=1024,
                          out_dtype=jnp.bfloat16, w2_buffers=None,
                          core_parallel=False,
                          vmem_headroom_bytes=8 * _MIB):
    """features: [B, S, H]; params from prepare_lm_head_params.

    Returns logits [B, S, V] in out_dtype (bf16 by default; do log-sum-exp in
    f32 downstream).  tile_n is sweepable (512 / 1024 recommended).
    """
    B, S, H = features.shape
    V = params["vocab_size"]
    w2 = params["w2"]
    Vp = w2.shape[1]
    tv = params["tile_v"]
    matmul_dtype = params["matmul_dtype"]
    mm_bytes = jnp.dtype(matmul_dtype).itemsize
    out_bytes = jnp.dtype(out_dtype).itemsize

    N = B * S
    # Cast before padding: pads half the bytes.
    x2d = features.reshape(N, H).astype(matmul_dtype)

    tn = min(tile_n, _round_up(N, 8))

    # Keep the tile config inside the chip's VMEM (v7x has only 64 MiB/TC).
    cap = _vmem_capacity_bytes()
    budget = cap * 7 // 10
    while (_vmem_estimate(tn, tv, H, mm_bytes, out_bytes) > budget
           and tv % 256 == 0 and tv > 128):
        tv //= 2                       # still divides Vp, still (.,128)-legal
    while (_vmem_estimate(tn, tv, H, mm_bytes, out_bytes) > budget
           and tn % 16 == 0 and tn > 8):
        tn //= 2
    vmem_need = _vmem_estimate(tn, tv, H, mm_bytes, out_bytes)
    vmem_limit = max(min(vmem_need + vmem_headroom_bytes, budget),
                     min(32 * _MIB, budget))

    Np = _round_up(N, tn)
    if Np != N:
        x2d = jnp.pad(x2d, ((0, Np - N), (0, 0)))

    # Optional deeper prefetch on the dominant (decoder weight) stream.
    w2_spec_kwargs = {}
    if w2_buffers is not None and w2_buffers != 2:
        w2_spec_kwargs["pipeline_mode"] = pl.Buffered(w2_buffers)
    w2_spec = pl.BlockSpec((H, tv), lambda i, j: (0, j), **w2_spec_kwargs)

    # Row axis parallel (megacore); vocab axis is the sequential inner loop so
    # the cached LN scratch stays valid across it.  CORE_PARALLEL actually
    # shards row tiles across v7x's two TensorCores.
    row_sem = pltpu.CORE_PARALLEL if core_parallel else "parallel"

    kernel = functools.partial(_lm_head_kernel, eps=eps)

    out2d = pl.pallas_call(
        kernel,
        out_shape=jax.ShapeDtypeStruct((Np, Vp), out_dtype),
        grid_spec=pltpu.PrefetchScalarGridSpec(
            num_scalar_prefetch=0,
            grid=(Np // tn, Vp // tv),
            in_specs=[
                pl.BlockSpec((tn, H), lambda i, j: (i, 0)),   # x rows
                pl.BlockSpec((H, H), lambda i, j: (0, 0)),    # dense weight
                pl.BlockSpec((1, H), lambda i, j: (0, 0)),    # dense bias
                pl.BlockSpec((1, H), lambda i, j: (0, 0)),    # ln gamma
                pl.BlockSpec((1, H), lambda i, j: (0, 0)),    # ln beta
                w2_spec,                                      # decoder weight tile
                pl.BlockSpec((1, tv), lambda i, j: (0, j)),   # decoder bias tile
            ],
            out_specs=pl.BlockSpec((tn, tv), lambda i, j: (i, j)),
            scratch_shapes=[pltpu.VMEM((tn, H), matmul_dtype)],  # cached LN
        ),
        compiler_params=pltpu.CompilerParams(
            dimension_semantics=(row_sem, "arbitrary"),
            vmem_limit_bytes=int(vmem_limit),
        ),
    )(x2d, params["w1"], params["b1"], params["gamma"], params["beta"],
      w2, params["b2"])

    return out2d[:N, :V].reshape(B, S, V)


def roberta_lm_head(features, dense_w, dense_b, ln_w, ln_b, dec_w, dec_b,
                    *, eps=1e-5, tile_n=1024, tile_v=1024,
                    matmul_dtype=jnp.bfloat16, out_dtype=jnp.bfloat16):
    """Convenience one-shot wrapper (prep + apply). For repeated calls, call
    prepare_lm_head_params once and reuse the result."""
    params = prepare_lm_head_params(dense_w, dense_b, ln_w, ln_b, dec_w, dec_b,
                                    tile_v=tile_v, matmul_dtype=matmul_dtype)
    return roberta_lm_head_apply(features, params, eps=eps, tile_n=tile_n,
                                 out_dtype=out_dtype)


# TODO(synk): optionally fuse the downstream softmax/cross-entropy so full
# logits never hit HBM (largest remaining stream after the decoder weight).


def _reference(features, dense_w, dense_b, ln_w, ln_b, dec_w, dec_b, eps=1e-5):
    x = features.astype(jnp.float32) @ dense_w + dense_b
    x = _gelu_erf(x)
    mu = jnp.mean(x, axis=-1, keepdims=True)
    var = jnp.mean((x - mu) ** 2, axis=-1, keepdims=True)
    x = (x - mu) / jnp.sqrt(var + eps) * ln_w + ln_b
    return x @ dec_w + dec_b


if __name__ == "__main__":
    # Small shapes consistent with the module: hidden=128, vocab=512.
    B, S, H, V = 2, 8, 128, 512
    eps = 1e-5

    key = jax.random.PRNGKey(0)
    k = jax.random.split(key, 6)
    features = jax.random.normal(k[0], (B, S, H), dtype=jnp.float32)

    # Deterministic synthetic parameters (module __init__ shapes), (in, out).
    dense_w = jax.random.normal(k[1], (H, H), dtype=jnp.float32) * 0.02
    dense_b = jax.random.normal(k[2], (H,), dtype=jnp.float32) * 0.02
    ln_w = jnp.ones((H,), dtype=jnp.float32)
    ln_b = jnp.zeros((H,), dtype=jnp.float32)
    dec_w = jax.random.normal(k[3], (H, V), dtype=jnp.float32) * 0.02
    dec_b = jnp.zeros((V,), dtype=jnp.float32)                     # self.bias

    # Parameter prep is hoisted out of the hot path (done once).
    params = prepare_lm_head_params(dense_w, dense_b, ln_w, ln_b, dec_w, dec_b)

    out = roberta_lm_head_apply(features, params, eps=eps)
    out = jax.block_until_ready(out)

    ref = _reference(features, dense_w, dense_b, ln_w, ln_b, dec_w, dec_b,
                     eps=eps)
    assert out.shape == (B, S, V)
    # bf16 MXU inputs + bf16 logits vs f32 reference: tolerance covers the
    # bf16 rounding of inputs, cached LN, and output store.
    assert jnp.allclose(out.astype(jnp.float32), ref,
                        atol=3e-2, rtol=3e-2), "mismatch vs reference"

    print("KERNEL_OK")
</pallas_src>

<mosaic_0001>
module attributes {stable_mosaic.version = 11 : i64} {
  func.func @_lm_head_kernel(%arg0: i32, %arg1: i32, %arg2: memref<16x128xbf16, #tpu.memory_space<vmem>>, %arg3: memref<128x128xbf16, #tpu.memory_space<vmem>>, %arg4: memref<1x128xf32, #tpu.memory_space<vmem>>, %arg5: memref<1x128xf32, #tpu.memory_space<vmem>>, %arg6: memref<1x128xf32, #tpu.memory_space<vmem>>, %arg7: memref<128x512xbf16, #tpu.memory_space<vmem>>, %arg8: memref<1x512xf32, #tpu.memory_space<vmem>>, %arg9: memref<16x512xbf16, #tpu.memory_space<vmem>>, %arg10: memref<16x128xbf16, #tpu.memory_space<vmem>>) attributes {dimension_semantics = [#tpu.dimension_semantics<parallel>, #tpu.dimension_semantics<arbitrary>], iteration_bounds = array<i64: 1, 1>, scalar_prefetch = 0 : i64, scratch_operands = 1 : i64, tpu.core_type = #tpu.core_type<tc>, window_params = [{transform_indices = @transform_0, window_bounds = array<i64: 16, 128>}, {pipeline_mode = #tpu.pipeline_mode<synchronous>, transform_indices = @transform_1, window_bounds = array<i64: 128, 128>}, {pipeline_mode = #tpu.pipeline_mode<synchronous>, transform_indices = @transform_2, window_bounds = array<i64: 1, 128>}, {pipeline_mode = #tpu.pipeline_mode<synchronous>, transform_indices = @transform_3, window_bounds = array<i64: 1, 128>}, {pipeline_mode = #tpu.pipeline_mode<synchronous>, transform_indices = @transform_4, window_bounds = array<i64: 1, 128>}, {transform_indices = @transform_5, window_bounds = array<i64: 128, 512>}, {transform_indices = @transform_6, window_bounds = array<i64: 1, 512>}, {transform_indices = @transform_7, window_bounds = array<i64: 16, 512>}]} {
    %c0_i32 = arith.constant 0 : i32
    %0 = arith.cmpi eq, %arg1, %c0_i32 : i32
    %1 = arith.extui %0 : i1 to i32
    %c0_i32_0 = arith.constant 0 : i32
    %2 = arith.cmpi ne, %1, %c0_i32_0 : i32
    scf.if %2 {
      %c0_8 = arith.constant 0 : index
      %c0_9 = arith.constant 0 : index
      %11 = vector.load %arg2[%c0_8, %c0_9] : memref<16x128xbf16, #tpu.memory_space<vmem>>, vector<16x128xbf16>
      %c0_10 = arith.constant 0 : index
      %c0_11 = arith.constant 0 : index
      %12 = vector.load %arg3[%c0_10, %c0_11] : memref<128x128xbf16, #tpu.memory_space<vmem>>, vector<128x128xbf16>
      %cst_12 = arith.constant dense<0.000000e+00> : vector<16x128xf32>
      %13 = tpu.matmul %11, %12, %cst_12 {dimension_numbers = #tpu.dot_dimension_numbers<[1], [0], [0], [1], [0, 0, 1, 1], [], []>} : vector<16x128xbf16>, vector<128x128xbf16>, vector<16x128xf32> -> vector<16x128xf32>
      %c0_13 = arith.constant 0 : index
      %c0_14 = arith.constant 0 : index
      %14 = vector.load %arg4[%c0_13, %c0_14] : memref<1x128xf32, #tpu.memory_space<vmem>>, vector<1x128xf32>
      %15 = vector.broadcast %14 : vector<1x128xf32> to vector<16x128xf32>
      %16 = arith.addf %13, %15 : vector<16x128xf32>
      %cst_15 = arith.constant 5.000000e-01 : f32
      %17 = vector.broadcast %cst_15 : f32 to vector<16x128xf32>
      %18 = arith.mulf %16, %17 : vector<16x128xf32>
      %cst_16 = arith.constant 1.41421354 : f32
      %19 = vector.broadcast %cst_16 : f32 to vector<16x128xf32>
      %20 = arith.divf %16, %19 : vector<16x128xf32>
      %21 = math.erf %20 : vector<16x128xf32>
      %cst_17 = arith.constant 1.000000e+00 : f32
      %22 = vector.broadcast %cst_17 : f32 to vector<16x128xf32>
      %23 = arith.addf %22, %21 : vector<16x128xf32>
      %24 = arith.mulf %18, %23 : vector<16x128xf32>
      %cst_18 = arith.constant dense<0.000000e+00> : vector<16xf32>
      %25 = vector.multi_reduction <add>, %24, %cst_18 [1] : vector<16x128xf32> to vector<16xf32>
      %26 = vector.shape_cast %25 : vector<16xf32> to vector<16x1xf32>
      %cst_19 = arith.constant 1.280000e+02 : f32
      %27 = vector.broadcast %cst_19 : f32 to vector<16x1xf32>
      %28 = arith.divf %26, %27 : vector<16x1xf32>
      %29 = vector.broadcast %28 : vector<16x1xf32> to vector<16x128xf32>
      %30 = arith.subf %24, %29 : vector<16x128xf32>
      %31 = arith.mulf %30, %30 : vector<16x128xf32>
      %cst_20 = arith.constant dense<0.000000e+00> : vector<16xf32>
      %32 = vector.multi_reduction <add>, %31, %cst_20 [1] : vector<16x128xf32> to vector<16xf32>
      %33 = vector.shape_cast %32 : vector<16xf32> to vector<16x1xf32>
      %cst_21 = arith.constant 1.280000e+02 : f32
      %34 = vector.broadcast %cst_21 : f32 to vector<16x1xf32>
      %35 = arith.divf %33, %34 : vector<16x1xf32>
      %cst_22 = arith.constant 9.99999974E-6 : f32
      %36 = vector.broadcast %cst_22 : f32 to vector<16x1xf32>
      %37 = arith.addf %35, %36 : vector<16x1xf32>
      %38 = math.rsqrt %37 : vector<16x1xf32>
      %c0_23 = arith.constant 0 : index
      %c0_24 = arith.constant 0 : index
      %39 = vector.load %arg5[%c0_23, %c0_24] : memref<1x128xf32, #tpu.memory_space<vmem>>, vector<1x128xf32>
      %40 = vector.broadcast %38 : vector<16x1xf32> to vector<16x128xf32>
      %41 = vector.broadcast %39 : vector<1x128xf32> to vector<16x128xf32>
      %42 = arith.mulf %40, %41 : vector<16x128xf32>
      %43 = arith.mulf %30, %42 : vector<16x128xf32>
      %c0_25 = arith.constant 0 : index
      %c0_26 = arith.constant 0 : index
      %44 = vector.load %arg6[%c0_25, %c0_26] : memref<1x128xf32, #tpu.memory_space<vmem>>, vector<1x128xf32>
      %45 = vector.broadcast %44 : vector<1x128xf32> to vector<16x128xf32>
      %46 = arith.addf %43, %45 : vector<16x128xf32>
      %47 = arith.truncf %46 : vector<16x128xf32> to vector<16x128xbf16>
      %c0_27 = arith.constant 0 : index
      %c0_28 = arith.constant 0 : index
      %48 = vector.load %arg10[%c0_27, %c0_28] : memref<16x128xbf16, #tpu.memory_space<vmem>>, vector<16x128xbf16>
      tpu.vector_store %arg10[%c0_27, %c0_28], %47 {strides = array<i32>} : memref<16x128xbf16, #tpu.memory_space<vmem>>, vector<16x128xbf16>,
    } else {
    }
    %c0 = arith.constant 0 : index
    %c0_1 = arith.constant 0 : index
    %3 = vector.load %arg10[%c0, %c0_1] : memref<16x128xbf16, #tpu.memory_space<vmem>>, vector<16x128xbf16>
    %c0_2 = arith.constant 0 : index
    %c0_3 = arith.constant 0 : index
    %4 = vector.load %arg7[%c0_2, %c0_3] : memref<128x512xbf16, #tpu.memory_space<vmem>>, vector<128x512xbf16>
    %cst = arith.constant dense<0.000000e+00> : vector<16x512xf32>
    %5 = tpu.matmul %3, %4, %cst {dimension_numbers = #tpu.dot_dimension_numbers<[1], [0], [0], [1], [0, 0, 1, 1], [], []>} : vector<16x128xbf16>, vector<128x512xbf16>, vector<16x512xf32> -> vector<16x512xf32>
    %c0_4 = arith.constant 0 : index
    %c0_5 = arith.constant 0 : index
    %6 = vector.load %arg8[%c0_4, %c0_5] : memref<1x512xf32, #tpu.memory_space<vmem>>, vector<1x512xf32>
    %7 = vector.broadcast %6 : vector<1x512xf32> to vector<16x512xf32>
    %8 = arith.addf %5, %7 : vector<16x512xf32>
    %9 = arith.truncf %8 : vector<16x512xf32> to vector<16x512xbf16>
    %c0_6 = arith.constant 0 : index
    %c0_7 = arith.constant 0 : index
    %10 = vector.load %arg9[%c0_6, %c0_7] : memref<16x512xbf16, #tpu.memory_space<vmem>>, vector<16x512xbf16>
    tpu.vector_store %arg9[%c0_6, %c0_7], %9 {strides = array<i32>} : memref<16x512xbf16, #tpu.memory_space<vmem>>, vector<16x512xbf16>,
    return
  }
  func.func @transform_0(%arg0: i32, %arg1: i32) -> (i32, i32) {
    %c0_i32 = arith.constant 0 : i32
    %c0_i32_0 = arith.constant 0 : i32
    return %arg0, %c0_i32 : i32, i32
  }
  func.func @transform_1(%arg0: i32, %arg1: i32) -> (i32, i32) {
    %c0_i32 = arith.constant 0 : i32
    %c0_i32_0 = arith.constant 0 : i32
    %c0_i32_1 = arith.constant 0 : i32
    return %c0_i32, %c0_i32_0 : i32, i32
  }
  func.func @transform_2(%arg0: i32, %arg1: i32) -> (i32, i32) {
    %c0_i32 = arith.constant 0 : i32
    %c0_i32_0 = arith.constant 0 : i32
    %c0_i32_1 = arith.constant 0 : i32
    return %c0_i32, %c0_i32_0 : i32, i32
  }
  func.func @transform_3(%arg0: i32, %arg1: i32) -> (i32, i32) {
    %c0_i32 = arith.constant 0 : i32
    %c0_i32_0 = arith.constant 0 : i32
    %c0_i32_1 = arith.constant 0 : i32
    return %c0_i32, %c0_i32_0 : i32, i32
  }
  func.func @transform_4(%arg0: i32, %arg1: i32) -> (i32, i32) {
    %c0_i32 = arith.constant 0 : i32
    %c0_i32_0 = arith.constant 0 : i32
    %c0_i32_1 = arith.constant 0 : i32
    return %c0_i32, %c0_i32_0 : i32, i32
  }
  func.func @transform_5(%arg0: i32, %arg1: i32) -> (i32, i32) {
    %c0_i32 = arith.constant 0 : i32
    %c0_i32_0 = arith.constant 0 : i32
    return %c0_i32, %arg1 : i32, i32
  }
  func.func @transform_6(%arg0: i32, %arg1: i32) -> (i32, i32) {
    %c0_i32 = arith.constant 0 : i32
    %c0_i32_0 = arith.constant 0 : i32
    return %c0_i32, %arg1 : i32, i32
  }
  func.func @transform_7(%arg0: i32, %arg1: i32) -> (i32, i32) {
    %c0_i32 = arith.constant 0 : i32
    return %arg0, %arg1 : i32, i32
  }
}

</mosaic_0001>

<llo_original>
// kernel: tpu_custom_call.1
$region0: #{tpu_custom_call.1}
  #allocation0 [shape = 'u32[]', space=smem, size = 0x4, offset = 0x4, fixed_abs, tag = 'smem constant byte address 0x4 - core index']
  #allocation1 [shape = 'u32[144,128]{1,0:T(1,128)}', space=vmem, size = 0x12000, scoped, tag = 'internal scratch']
  #allocation2 [shape = 'bf16[16,128]{1,0:T(16,128)(2,1)}', space=vmem, size = 0x1000, scoped, tag = 'scratch operand']
  %s0 = inlined_call_operand.hbm [shape: bf16[16,128], index: 0, kind: input, shape index: {}]
  %s1 = inlined_call_operand.hbm [shape: bf16[128,128], index: 1, kind: input, shape index: {}]
  %s2 = inlined_call_operand.vmem [shape: f32[1,128], index: 2, kind: input, shape index: {}]
  %s3 = inlined_call_operand.vmem [shape: f32[1,128], index: 3, kind: input, shape index: {}]
  %s4 = inlined_call_operand.vmem [shape: f32[1,128], index: 4, kind: input, shape index: {}]
  %s5 = inlined_call_operand.hbm [shape: bf16[128,512], index: 5, kind: input, shape index: {}]
  %s6 = inlined_call_operand.vmem [shape: f32[1,512], index: 6, kind: input, shape index: {}]
  %s7 = inlined_call_operand.hbm [shape: bf16[16,512], index: 7, kind: output, shape index: {}]
  %s8 = sld [smem:[#allocation0]]
  $region54: #{tpu_custom_call.1} parent=0
    _
  %s10 = ssub.s32 1, %s8
  %s11 = scalar_select 0, %s10, %s8
  $region1: #{tpu_custom_call.1} parent=0
    #allocation3 [shape = 'u8[4096]{0}', space=vmem, size = 0x1000, scoped, tag = 'input window, operand 0, single buffered']
    #allocation4 [shape = 's32[1]{0}', space=sflag, size = 0x4, scoped, tag = 'scoped memory for tpu_custom_call.1']
    #allocation5 [shape = 's32[1]{0}', space=sflag, size = 0x4, scoped, tag = 'scoped memory for tpu_custom_call.1']
    #allocation6 [shape = 'u8[32768]{0}', space=vmem, size = 0x8000, scoped, tag = 'input window, operand 1, single buffered']
    #allocation7 [shape = 's32[1]{0}', space=sflag, size = 0x4, scoped, tag = 'scoped memory for tpu_custom_call.1']
    #allocation8 [shape = 'u8[131072]{0}', space=vmem, size = 0x20000, scoped, tag = 'input window, operand 5, single buffered']
    #allocation9 [shape = 'u8[16384]{0}', space=vmem, size = 0x4000, scoped, tag = 'output window, operand 0, single buffered']
    %12 = vsyncpa [#allocation4], 0
    %13 = vsyncpa [#allocation7], 0
    %14 = vsyncpa [#allocation5], 0
    // Predicated region
    $region2: #{tpu_custom_call.1} parent=1 // pred_check
      _
    $region3: #{tpu_custom_call.1} parent=1 // pred_check_branch
      %16 = sbr.rel (0) target = $region5
    $region4: #{tpu_custom_call.1} parent=1 // pred_region
      %s18 = ssub.s32 128, 128
      %19 = vsyncadd [#allocation4], %s18
      %s20 = sshll.u32 [#allocation3], 4
      %s21 = int_to_ptr.vmem [resolvable:$true] %s20
      %26 = dma.hbm_to_vmem [thread:$0]  %s0, 128, %s21, [#allocation4], 64, 64, 4
    $region5: #{tpu_custom_call.1} parent=1 // pred_fallthru
      _
    // Predicated region
    $region6: #{tpu_custom_call.1} parent=1 // pred_check
      _
    $region7: #{tpu_custom_call.1} parent=1 // pred_check_branch
      %28 = sbr.rel (0) target = $region9
    $region8: #{tpu_custom_call.1} parent=1 // pred_region
      %s30 = ssub.s32 1024, 1024
      %31 = vsyncadd [#allocation7], %s30
      %s32 = sshll.u32 [#allocation6], 4
      %s33 = int_to_ptr.vmem [resolvable:$true] %s32
      %38 = dma.hbm_to_vmem [thread:$0]  %s1, 1024, %s33, [#allocation7], 64, 64, 4
    $region9: #{tpu_custom_call.1} parent=1 // pred_fallthru
      _
    // Predicated region
    $region10: #{tpu_custom_call.1} parent=1 // pred_check
      _
    $region11: #{tpu_custom_call.1} parent=1 // pred_check_branch
      %40 = sbr.rel (0) target = $region13
    $region12: #{tpu_custom_call.1} parent=1 // pred_region
      _
    $region13: #{tpu_custom_call.1} parent=1 // pred_fallthru
      _
    // Predicated region
    $region14: #{tpu_custom_call.1} parent=1 // pred_check
      _
    $region15: #{tpu_custom_call.1} parent=1 // pred_check_branch
      %42 = sbr.rel (0) target = $region17
    $region16: #{tpu_custom_call.1} parent=1 // pred_region
      _
    $region17: #{tpu_custom_call.1} parent=1 // pred_fallthru
      _
    // Predicated region
    $region18: #{tpu_custom_call.1} parent=1 // pred_check
      _
    $region19: #{tpu_custom_call.1} parent=1 // pred_check_branch
      %44 = sbr.rel (0) target = $region21
    $region20: #{tpu_custom_call.1} parent=1 // pred_region
      _
    $region21: #{tpu_custom_call.1} parent=1 // pred_fallthru
      _
    // Predicated region
    $region22: #{tpu_custom_call.1} parent=1 // pred_check
      _
    $region23: #{tpu_custom_call.1} parent=1 // pred_check_branch
      %46 = sbr.rel (0) target = $region25
    $region24: #{tpu_custom_call.1} parent=1 // pred_region
      %s48 = ssub.s32 4096, 4096
      %49 = vsyncadd [#allocation7], %s48
      %s50 = sshll.u32 [#allocation8], 4
      %s51 = int_to_ptr.vmem [resolvable:$true] %s50
      %56 = dma.hbm_to_vmem [thread:$0]  %s5, 4096, %s51, [#allocation7], 256, 256, 16
    $region25: #{tpu_custom_call.1} parent=1 // pred_fallthru
      _
    // Predicated region
    $region26: #{tpu_custom_call.1} parent=1 // pred_check
      _
    $region27: #{tpu_custom_call.1} parent=1 // pred_check_branch
      %58 = sbr.rel (0) target = $region29
    $region28: #{tpu_custom_call.1} parent=1 // pred_region
      _
    $region29: #{tpu_custom_call.1} parent=1 // pred_fallthru
      _
    // Predicated region
    $region30: #{tpu_custom_call.1} parent=1 // pred_check
      _
    $region31: #{tpu_custom_call.1} parent=1 // pred_check_branch
      %60 = sbr.rel (0) target = $region33
    $region32: #{tpu_custom_call.1} parent=1 // pred_region
      %61 = dma.done [#allocation4], 128
    $region33: #{tpu_custom_call.1} parent=1 // pred_fallthru
      _
    // Predicated region
    $region34: #{tpu_custom_call.1} parent=1 // pred_check
      _
    $region35: #{tpu_custom_call.1} parent=1 // pred_check_branch
      %63 = sbr.rel (0) target = $region37
    $region36: #{tpu_custom_call.1} parent=1 // pred_region
      %64 = dma.done [#allocation7], 1024
    $region37: #{tpu_custom_call.1} parent=1 // pred_fallthru
      _
    // Predicated region
    $region38: #{tpu_custom_call.1} parent=1 // pred_check
      _
    $region39: #{tpu_custom_call.1} parent=1 // pred_check_branch
      %66 = sbr.rel (0) target = $region41
    $region40: #{tpu_custom_call.1} parent=1 // pred_region
      %67 = dma.done [#allocation7], 4096
    $region41: #{tpu_custom_call.1} parent=1 // pred_fallthru
      _
    %p69 = scmp.eq.s32.totalorder 0, 0
    // Predicated region
    $region42: #{tpu_custom_call.1} parent=1 // pred_check
      %p70 = pneg %p69
    $region43: #{tpu_custom_call.1} parent=1 // pred_check_branch
      %72 = sbr.rel (%p70) target = $region45
    $region44: #{tpu_custom_call.1} parent=1 // pred_region
      %v73 = vld [vmem:[#allocation3] sm:$0xf]
      %v74 = vld [vmem:[#allocation3 + $0x4] sm:$0xf]
      %v75 = vld [vmem:[#allocation6] sm:$0xf]
      %v76 = vld [vmem:[#allocation6 + $0x4] sm:$0xf]
      %v77 = vld [vmem:[#allocation6 + $0x8] sm:$0xf]
      %v78 = vld [vmem:[#allocation6 + $0xc] sm:$0xf]
      %v79 = vld [vmem:[#allocation6 + $0x10] sm:$0xf]
      %v80 = vld [vmem:[#allocation6 + $0x14] sm:$0xf]
      %v81 = vld [vmem:[#allocation6 + $0x18] sm:$0xf]
      %v82 = vld [vmem:[#allocation6 + $0x1c] sm:$0xf]
      %v83 = vld [vmem:[#allocation6 + $0x20] sm:$0xf]
      %v84 = vld [vmem:[#allocation6 + $0x24] sm:$0xf]
      %v85 = vld [vmem:[#allocation6 + $0x28] sm:$0xf]
      %v86 = vld [vmem:[#allocation6 + $0x2c] sm:$0xf]
      %v87 = vld [vmem:[#allocation6 + $0x30] sm:$0xf]
      %v88 = vld [vmem:[#allocation6 + $0x34] sm:$0xf]
      %v89 = vld [vmem:[#allocation6 + $0x38] sm:$0xf]
      %v90 = vld [vmem:[#allocation6 + $0x3c] sm:$0xf]
      %v91 = vld [vmem:[%s2] sm:$0x1]
      %v93 = vlaneseq
      %v94 = vshrl.u32 %v93, 7
      %v95 = vsub.s32 0, %v94
      %v96 = vrot.slane %v91, %v95
      %v100 = vunpack.c.l.b16 %v73
      %v101 = vunpack.c.l.b16 %v74
      %v102 = vpack.c.b16 %v101, %v100
      %v120 = vunpack.c.l.b16 %v75
      %v121 = vunpack.c.l.b16 %v76
      %v122 = vunpack.c.l.b16 %v77
      %v123 = vunpack.c.l.b16 %v78
      %v124 = vunpack.c.l.b16 %v79
      %v125 = vunpack.c.l.b16 %v80
      %v126 = vunpack.c.l.b16 %v81
      %v127 = vunpack.c.l.b16 %v82
      %v128 = vunpack.c.l.b16 %v83
      %v129 = vunpack.c.l.b16 %v84
      %v130 = vunpack.c.l.b16 %v85
      %v131 = vunpack.c.l.b16 %v86
      %v132 = vunpack.c.l.b16 %v87
      %v133 = vunpack.c.l.b16 %v88
      %v134 = vunpack.c.l.b16 %v89
      %v135 = vunpack.c.l.b16 %v90
      %v136 = vpack.c.b16 %v121, %v120
      %v137 = vpack.c.b16 %v123, %v122
      %v138 = vpack.c.b16 %v125, %v124
      %v139 = vpack.c.b16 %v127, %v126
      %v140 = vpack.c.b16 %v129, %v128
      %v141 = vpack.c.b16 %v131, %v130
      %v142 = vpack.c.b16 %v133, %v132
      %v143 = vpack.c.b16 %v135, %v134
      %152 = vmatprep.subr.bf16.mxu0 0
      %153 = vmatpush1.bf16.msra.mxu0 %v136
      %154 = vmatprep.subr.bf16.mxu0 0
      %155 = vmatpush1.bf16.msra.mxu0 %v137
      %156 = vmatprep.subr.bf16.mxu0 0
      %157 = vmatpush1.bf16.msra.mxu0 %v138
      %158 = vmatprep.subr.bf16.mxu0 0
      %159 = vmatpush1.bf16.msra.mxu0 %v139
      %160 = vmatprep.subr.bf16.mxu0 0
      %161 = vmatpush1.bf16.msra.mxu0 %v140
      %162 = vmatprep.subr.bf16.mxu0 0
      %163 = vmatpush1.bf16.msra.mxu0 %v141
      %164 = vmatprep.subr.bf16.mxu0 0
      %165 = vmatpush1.bf16.msra.mxu0 %v142
      %166 = vmatprep.subr.bf16.mxu0 0
      %167 = vmatpush1.bf16.msra.mxu0 %v143
      %168 = vmatprep.subr.bf16.mxu0 0
      %169 = vmatpush1.bf16.msra.mxu0 0
      %170 = vmatprep.subr.bf16.mxu0 0
      %171 = vmatpush1.bf16.msra.mxu0 0
      %172 = vmatprep.subr.bf16.mxu0 0
      %173 = vmatpush1.bf16.msra.mxu0 0
      %174 = vmatprep.subr.bf16.mxu0 0
      %175 = vmatpush1.bf16.msra.mxu0 0
      %176 = vmatprep.subr.bf16.mxu0 0
      %177 = vmatpush1.bf16.msra.mxu0 0
      %178 = vmatprep.subr.bf16.mxu0 0
      %179 = vmatpush1.bf16.msra.mxu0 0
      %180 = vmatprep.subr.bf16.mxu0 0
      %181 = vmatpush1.bf16.msra.mxu0 0
      %182 = vmatprep.subr.bf16.mxu0 0
      %183 = vmatpush1.bf16.msra.mxu0 0
      %184 = vmatprep.mubr.bf16.mxu0 0
      %185 = vmatmul.mubr.bf16.gmra.mrb[0].mxu0 %v102
      %v186 = vpop.f32.mrb[0].mxu0
      %v187 = vadd.f32 %v96, %v186
      %v188 = vpop.f32.mrb[0].mxu0
      %v189 = vpop.f32.mrb[0].mxu0
      %v190 = vadd.f32 %v96, %v189
      %v191 = vpop.f32.mrb[0].mxu0
      %192 = vdwg.mxu0
      %v193 = vmul.f32 %v187, 0.5
      %v194 = vmul.f32 %v190, 0.5
      %v195 = vrcp.pop 1.4142135
      %v196 = vmul.f32 %v187, %v195
      %v197 = vmul.f32 %v190, %v195
      %v198 = verf.f32.pop %v196
      %v199 = verf.f32.pop %v197
      %v200 = vadd.f32 %v198, 1.0
      %v201 = vadd.f32 %v199, 1.0
      %v202 = vmul.f32 %v193, %v200
      %v203 = vmul.f32 %v194, %v201
      %204 = vadd.xlane.f32.xlu0 %v202
      %v205 = vpop.xlane.xlu0 %204
      %206 = vadd.xlane.f32.xlu0 %v203
      %v207 = vpop.xlane.xlu0 %206
      %v208 = vrcp.pop 128.0
      %v209 = vmul.f32 %v205, %v208
      %v210 = vmul.f32 %v207, %v208
      %v211 = vsub.f32 %v202, %v209
      %v212 = vsub.f32 %v203, %v210
      %v213 = vmul.f32 %v211, %v211
      %v214 = vmul.f32 %v212, %v212
      %215 = vadd.xlane.f32.xlu0 %v213
      %v216 = vpop.xlane.xlu0 %215
      %217 = vadd.xlane.f32.xlu0 %v214
      %v218 = vpop.xlane.xlu0 %217
      %v219 = vmul.f32 %v216, %v208
      %v220 = vmul.f32 %v218, %v208
      %v221 = vadd.f32 %v219, 1e-05
      %v222 = vadd.f32 %v220, 1e-05
      %v223 = vrsqrt.pop %v221
      %v224 = vrsqrt.pop %v222
      %v225 = vld [vmem:[%s3] sm:$0x1]
      %v227 = vlaneseq
      %v228 = vshrl.u32 %v227, 7
      %v229 = vsub.s32 0, %v228
      %v230 = vrot.slane %v225, %v229
      %v232 = vmul.f32 %v223, %v230
      %v233 = vmul.f32 %v224, %v230
      %v234 = vmul.f32 %v211, %v232
      %v235 = vmul.f32 %v212, %v233
      %v236 = vld [vmem:[%s4] sm:$0x1]
      %v238 = vlaneseq
      %v239 = vshrl.u32 %v238, 7
      %v240 = vsub.s32 0, %v239
      %v241 = vrot.slane %v236, %v240
      %v243 = vadd.f32 %v234, %v241
      %v244 = vadd.f32 %v235, %v241
      %v245 = vpack.c.bf16 %v244, %v243
      %246 = vst [vmem:[#allocation2] sm:$0xff] %v245
    $region45: #{tpu_custom_call.1} parent=1 // pred_fallthru
      _
    %v247 = vld [vmem:[#allocation2] sm:$0xff]
    %v248 = vld [vmem:[#allocation8] sm:$0xff]
    %v249 = vld [vmem:[#allocation8 + $0x8] sm:$0xff]
    %v250 = vld [vmem:[#allocation8 + $0x10] sm:$0xff]
    %v251 = vld [vmem:[#allocation8 + $0x18] sm:$0xff]
    %v252 = vld [vmem:[#allocation8 + $0x20] sm:$0xff]
    %v253 = vld [vmem:[#allocation8 + $0x28] sm:$0xff]
    %v254 = vld [vmem:[#allocation8 + $0x30] sm:$0xff]
    %v255 = vld [vmem:[#allocation8 + $0x38] sm:$0xff]
    %v256 = vld [vmem:[#allocation8 + $0x40] sm:$0xff]
    %v257 = vld [vmem:[#allocation8 + $0x48] sm:$0xff]
    %v258 = vld [vmem:[#allocation8 + $0x50] sm:$0xff]
    %v259 = vld [vmem:[#allocation8 + $0x58] sm:$0xff]
    %v260 = vld [vmem:[#allocation8 + $0x60] sm:$0xff]
    %v261 = vld [vmem:[#allocation8 + $0x68] sm:$0xff]
    %v262 = vld [vmem:[#allocation8 + $0x70] sm:$0xff]
    %v263 = vld [vmem:[#allocation8 + $0x78] sm:$0xff]
    %v264 = vld [vmem:[#allocation8 + $0x80] sm:$0xff]
    %v265 = vld [vmem:[#allocation8 + $0x88] sm:$0xff]
    %v266 = vld [vmem:[#allocation8 + $0x90] sm:$0xff]
    %v267 = vld [vmem:[#allocation8 + $0x98] sm:$0xff]
    %v268 = vld [vmem:[#allocation8 + $0xa0] sm:$0xff]
    %v269 = vld [vmem:[#allocation8 + $0xa8] sm:$0xff]
    %v270 = vld [vmem:[#allocation8 + $0xb0] sm:$0xff]
    %v271 = vld [vmem:[#allocation8 + $0xb8] sm:$0xff]
    %v272 = vld [vmem:[#allocation8 + $0xc0] sm:$0xff]
    %v273 = vld [vmem:[#allocation8 + $0xc8] sm:$0xff]
    %v274 = vld [vmem:[#allocation8 + $0xd0] sm:$0xff]
    %v275 = vld [vmem:[#allocation8 + $0xd8] sm:$0xff]
    %v276 = vld [vmem:[#allocation8 + $0xe0] sm:$0xff]
    %v277 = vld [vmem:[#allocation8 + $0xe8] sm:$0xff]
    %v278 = vld [vmem:[#allocation8 + $0xf0] sm:$0xff]
    %v279 = vld [vmem:[#allocation8 + $0xf8] sm:$0xff]
    %v280 = vld [vmem:[%s6] sm:$0xf]
    %v282 = vlaneseq
    %v283 = vshrl.u32 %v282, 7
    %v284 = vsub.s32 0, %v283
    %v285 = vrot.slane %v280, %v284
    %v286 = vlaneseq
    %v287 = vshrl.u32 %v286, 7
    %v288 = vsub.s32 1, %v287
    %v289 = vrot.slane %v280, %v288
    %v290 = vlaneseq
    %v291 = vshrl.u32 %v290, 7
    %v292 = vsub.s32 2, %v291
    %v293 = vrot.slane %v280, %v292
    %v294 = vlaneseq
    %v295 = vshrl.u32 %v294, 7
    %v296 = vsub.s32 3, %v295
    %v297 = vrot.slane %v280, %v296
    %v334 = vunpack.c.l.b16 %v248
    %v335 = vunpack.c.h.b16 %v248
    %v336 = vunpack.c.l.b16 %v249
    %v337 = vunpack.c.h.b16 %v249
    %v338 = vunpack.c.l.b16 %v250
    %v339 = vunpack.c.h.b16 %v250
    %v340 = vunpack.c.l.b16 %v251
    %v341 = vunpack.c.h.b16 %v251
    %v342 = vunpack.c.l.b16 %v252
    %v343 = vunpack.c.h.b16 %v252
    %v344 = vunpack.c.l.b16 %v253
    %v345 = vunpack.c.h.b16 %v253
    %v346 = vunpack.c.l.b16 %v254
    %v347 = vunpack.c.h.b16 %v254
    %v348 = vunpack.c.l.b16 %v255
    %v349 = vunpack.c.h.b16 %v255
    %v350 = vunpack.c.l.b16 %v256
    %v351 = vunpack.c.h.b16 %v256
    %v352 = vunpack.c.l.b16 %v257
    %v353 = vunpack.c.h.b16 %v257
    %v354 = vunpack.c.l.b16 %v258
    %v355 = vunpack.c.h.b16 %v258
    %v356 = vunpack.c.l.b16 %v259
    %v357 = vunpack.c.h.b16 %v259
    %v358 = vunpack.c.l.b16 %v260
    %v359 = vunpack.c.h.b16 %v260
    %v360 = vunpack.c.l.b16 %v261
    %v361 = vunpack.c.h.b16 %v261
    %v362 = vunpack.c.l.b16 %v262
    %v363 = vunpack.c.h.b16 %v262
    %v364 = vunpack.c.l.b16 %v263
    %v365 = vunpack.c.h.b16 %v263
    %v366 = vunpack.c.l.b16 %v264
    %v367 = vunpack.c.h.b16 %v264
    %v368 = vunpack.c.l.b16 %v265
    %v369 = vunpack.c.h.b16 %v265
    %v370 = vunpack.c.l.b16 %v266
    %v371 = vunpack.c.h.b16 %v266
    %v372 = vunpack.c.l.b16 %v267
    %v373 = vunpack.c.h.b16 %v267
    %v374 = vunpack.c.l.b16 %v268
    %v375 = vunpack.c.h.b16 %v268
    %v376 = vunpack.c.l.b16 %v269
    %v377 = vunpack.c.h.b16 %v269
    %v378 = vunpack.c.l.b16 %v270
    %v379 = vunpack.c.h.b16 %v270
    %v380 = vunpack.c.l.b16 %v271
    %v381 = vunpack.c.h.b16 %v271
    %v382 = vunpack.c.l.b16 %v272
    %v383 = vunpack.c.h.b16 %v272
    %v384 = vunpack.c.l.b16 %v273
    %v385 = vunpack.c.h.b16 %v273
    %v386 = vunpack.c.l.b16 %v274
    %v387 = vunpack.c.h.b16 %v274
    %v388 = vunpack.c.l.b16 %v275
    %v389 = vunpack.c.h.b16 %v275
    %v390 = vunpack.c.l.b16 %v276
    %v391 = vunpack.c.h.b16 %v276
    %v392 = vunpack.c.l.b16 %v277
    %v393 = vunpack.c.h.b16 %v277
    %v394 = vunpack.c.l.b16 %v278
    %v395 = vunpack.c.h.b16 %v278
    %v396 = vunpack.c.l.b16 %v279
    %v397 = vunpack.c.h.b16 %v279
    %v398 = vpack.c.b16 %v338, %v334
    %v399 = vpack.c.b16 %v339, %v335
    %v400 = vpack.c.b16 %v340, %v336
    %v401 = vpack.c.b16 %v341, %v337
    %v402 = vpack.c.b16 %v346, %v342
    %v403 = vpack.c.b16 %v347, %v343
    %v404 = vpack.c.b16 %v348, %v344
    %v405 = vpack.c.b16 %v349, %v345
    %v406 = vpack.c.b16 %v354, %v350
    %v407 = vpack.c.b16 %v355, %v351
    %v408 = vpack.c.b16 %v356, %v352
    %v409 = vpack.c.b16 %v357, %v353
    %v410 = vpack.c.b16 %v362, %v358
    %v411 = vpack.c.b16 %v363, %v359
    %v412 = vpack.c.b16 %v364, %v360
    %v413 = vpack.c.b16 %v365, %v361
    %v414 = vpack.c.b16 %v370, %v366
    %v415 = vpack.c.b16 %v371, %v367
    %v416 = vpack.c.b16 %v372, %v368
    %v417 = vpack.c.b16 %v373, %v369
    %v418 = vpack.c.b16 %v378, %v374
    %v419 = vpack.c.b16 %v379, %v375
    %v420 = vpack.c.b16 %v380, %v376
    %v421 = vpack.c.b16 %v381, %v377
    %v422 = vpack.c.b16 %v386, %v382
    %v423 = vpack.c.b16 %v387, %v383
    %v424 = vpack.c.b16 %v388, %v384
    %v425 = vpack.c.b16 %v389, %v385
    %v426 = vpack.c.b16 %v394, %v390
    %v427 = vpack.c.b16 %v395, %v391
    %v428 = vpack.c.b16 %v396, %v392
    %v429 = vpack.c.b16 %v397, %v393
    %462 = vmatprep.subr.bf16.mxu0 %v399
    %463 = vmatpush1.bf16.msra.mxu0 %v398
    %464 = vmatprep.subr.bf16.mxu0 %v403
    %465 = vmatpush1.bf16.msra.mxu0 %v402
    %466 = vmatprep.subr.bf16.mxu0 %v407
    %467 = vmatpush1.bf16.msra.mxu0 %v406
    %468 = vmatprep.subr.bf16.mxu0 %v411
    %469 = vmatpush1.bf16.msra.mxu0 %v410
    %470 = vmatprep.subr.bf16.mxu0 %v415
    %471 = vmatpush1.bf16.msra.mxu0 %v414
    %472 = vmatprep.subr.bf16.mxu0 %v419
    %473 = vmatpush1.bf16.msra.mxu0 %v418
    %474 = vmatprep.subr.bf16.mxu0 %v423
    %475 = vmatpush1.bf16.msra.mxu0 %v422
    %476 = vmatprep.subr.bf16.mxu0 %v427
    %477 = vmatpush1.bf16.msra.mxu0 %v426
    %478 = vmatprep.subr.bf16.mxu0 0
    %479 = vmatpush1.bf16.msra.mxu0 0
    %480 = vmatprep.subr.bf16.mxu0 0
    %481 = vmatpush1.bf16.msra.mxu0 0
    %482 = vmatprep.subr.bf16.mxu0 0
    %483 = vmatpush1.bf16.msra.mxu0 0
    %484 = vmatprep.subr.bf16.mxu0 0
    %485 = vmatpush1.bf16.msra.mxu0 0
    %486 = vmatprep.subr.bf16.mxu0 0
    %487 = vmatpush1.bf16.msra.mxu0 0
    %488 = vmatprep.subr.bf16.mxu0 0
    %489 = vmatpush1.bf16.msra.mxu0 0
    %490 = vmatprep.subr.bf16.mxu0 0
    %491 = vmatpush1.bf16.msra.mxu0 0
    %492 = vmatprep.subr.bf16.mxu0 0
    %493 = vmatpush1.bf16.msra.mxu0 0
    %494 = vmatprep.mubr.bf16.mxu0 0
    %495 = vmatmul.mubr.bf16.gmra.mrb[0].mxu0 %v247
    %v496 = vpop.f32.mrb[0].mxu0
    %v497 = vadd.f32 %v285, %v496
    %v498 = vpop.f32.mrb[0].mxu0
    %v499 = vadd.f32 %v289, %v498
    %v500 = vpop.f32.mrb[0].mxu0
    %v501 = vadd.f32 %v285, %v500
    %v502 = vpop.f32.mrb[0].mxu0
    %v503 = vadd.f32 %v289, %v502
    %504 = vdwg.mxu0
    %505 = vmatprep.subr.bf16.mxu0 %v401
    %506 = vmatpush1.bf16.msra.mxu0 %v400
    %507 = vmatprep.subr.bf16.mxu0 %v405
    %508 = vmatpush1.bf16.msra.mxu0 %v404
    %509 = vmatprep.subr.bf16.mxu0 %v409
    %510 = vmatpush1.bf16.msra.mxu0 %v408
    %511 = vmatprep.subr.bf16.mxu0 %v413
    %512 = vmatpush1.bf16.msra.mxu0 %v412
    %513 = vmatprep.subr.bf16.mxu0 %v417
    %514 = vmatpush1.bf16.msra.mxu0 %v416
    %515 = vmatprep.subr.bf16.mxu0 %v421
    %516 = vmatpush1.bf16.msra.mxu0 %v420
    %517 = vmatprep.subr.bf16.mxu0 %v425
    %518 = vmatpush1.bf16.msra.mxu0 %v424
    %519 = vmatprep.subr.bf16.mxu0 %v429
    %520 = vmatpush1.bf16.msra.mxu0 %v428
    %521 = vmatprep.subr.bf16.mxu0 0
    %522 = vmatpush1.bf16.msra.mxu0 0
    %523 = vmatprep.subr.bf16.mxu0 0
    %524 = vmatpush1.bf16.msra.mxu0 0
    %525 = vmatprep.subr.bf16.mxu0 0
    %526 = vmatpush1.bf16.msra.mxu0 0
    %527 = vmatprep.subr.bf16.mxu0 0
    %528 = vmatpush1.bf16.msra.mxu0 0
    %529 = vmatprep.subr.bf16.mxu0 0
    %530 = vmatpush1.bf16.msra.mxu0 0
    %531 = vmatprep.subr.bf16.mxu0 0
    %532 = vmatpush1.bf16.msra.mxu0 0
    %533 = vmatprep.subr.bf16.mxu0 0
    %534 = vmatpush1.bf16.msra.mxu0 0
    %535 = vmatprep.subr.bf16.mxu0 0
    %536 = vmatpush1.bf16.msra.mxu0 0
    %537 = vmatprep.mubr.bf16.mxu0 0
    %538 = vmatmul.mubr.bf16.gmra.mrb[0].mxu0 %v247
    %v539 = vpop.f32.mrb[0].mxu0
    %v540 = vadd.f32 %v293, %v539
    %v541 = vpop.f32.mrb[0].mxu0
    %v542 = vadd.f32 %v297, %v541
    %v543 = vpop.f32.mrb[0].mxu0
    %v544 = vadd.f32 %v293, %v543
    %v545 = vpop.f32.mrb[0].mxu0
    %v546 = vadd.f32 %v297, %v545
    %547 = vdwg.mxu0
    %v548 = vpack.c.bf16 %v501, %v497
    %v549 = vpack.c.bf16 %v503, %v499
    %v550 = vpack.c.bf16 %v544, %v540
    %v551 = vpack.c.bf16 %v546, %v542
    %v556 = vunpack.c.l.b16 %v548
    %v557 = vunpack.c.l.b16 %v549
    %v558 = vunpack.c.l.b16 %v550
    %v559 = vunpack.c.l.b16 %v551
    %v560 = vunpack.c.h.b16 %v548
    %v561 = vunpack.c.h.b16 %v549
    %v562 = vunpack.c.h.b16 %v550
    %v563 = vunpack.c.h.b16 %v551
    %v564 = vpack.c.b16 %v557, %v556
    %v565 = vpack.c.b16 %v559, %v558
    %v566 = vpack.c.b16 %v561, %v560
    %v567 = vpack.c.b16 %v563, %v562
    %572 = vst [vmem:[#allocation9] sm:$0xff] %v564
    %573 = vst [vmem:[#allocation9 + $0x8] sm:$0xff] %v565
    %574 = vst [vmem:[#allocation9 + $0x10] sm:$0xff] %v566
    %575 = vst [vmem:[#allocation9 + $0x18] sm:$0xff] %v567
    // Predicated region
    $region46: #{tpu_custom_call.1} parent=1 // pred_check
      _
    $region47: #{tpu_custom_call.1} parent=1 // pred_check_branch
      %577 = sbr.rel (0) target = $region49
    $region48: #{tpu_custom_call.1} parent=1 // pred_region
      %s579 = ssub.s32 512, 512
      %580 = vsyncadd [#allocation5], %s579
      %s581 = sshll.u32 [#allocation9], 4
      %s582 = int_to_ptr.vmem [resolvable:$true] %s581
      %587 = dma.vmem_to_hbm [thread:$0]  %s582, 512, %s7, [#allocation5], 256, 256, 16
    $region49: #{tpu_custom_call.1} parent=1 // pred_fallthru
      _
    // Predicated region
    $region50: #{tpu_custom_call.1} parent=1 // pred_check
      _
    $region51: #{tpu_custom_call.1} parent=1 // pred_check_branch
      %589 = sbr.rel (0) target = $region53
    $region52: #{tpu_custom_call.1} parent=1 // pred_region
      %590 = dma.done [#allocation5], 512
    $region53: #{tpu_custom_call.1} parent=1 // pred_fallthru
      _
    %591 = vsyncpa [#allocation4], 1
    %592 = vsyncpa [#allocation7], 1
    %593 = vsyncpa [#allocation5], 1

</llo_original>
